<compile_context>
chip_gen: v7x
topology: tpu7x:2x2x1
jax: 0.10.0
libtpu: 0.0.40
codegen_flags: <defaults>
</compile_context>

<pallas_src>
import functools

import jax
import jax.numpy as jnp
import numpy as np
from jax.experimental import pallas as pl
from jax.experimental.pallas import tpu as pltpu


def _round_up(x, m):
    return ((x + m - 1) // m) * m


# ----------------------------------------------------------------------------
# Deterministic "parameters": fused windowed DFT weight and HTK mel filterbank
# ----------------------------------------------------------------------------
def _hann_window(n_fft):
    # torch.hann_window(n_fft), periodic=True
    n = np.arange(n_fft, dtype=np.float64)
    return 0.5 - 0.5 * np.cos(2.0 * np.pi * n / n_fft)


def _fused_dft_weight(n_fft, n_freq_pad):
    """(n_fft, 2*n_freq_pad) weight: [window*cos | window*sin], zero-padded."""
    n_freq = n_fft // 2 + 1
    n = np.arange(n_fft, dtype=np.float64)[:, None]            # (n_fft, 1)
    k = np.arange(n_freq, dtype=np.float64)[None, :]            # (1, n_freq)
    ang = 2.0 * np.pi * n * k / n_fft
    w = _hann_window(n_fft)[:, None]                             # (n_fft, 1)
    out = np.zeros((n_fft, 2 * n_freq_pad), dtype=np.float32)
    out[:, :n_freq] = (np.cos(ang) * w).astype(np.float32)
    out[:, n_freq_pad:n_freq_pad + n_freq] = (np.sin(ang) * w).astype(np.float32)
    return out


def _mel_filterbank_padded(sample_rate, n_fft, n_mels, n_freq_pad, n_mels_pad):
    # torchaudio.functional.melscale_fbanks, mel_scale="htk", norm=None,
    # f_min=0, f_max=sample_rate/2 — zero padded to (n_freq_pad, n_mels_pad).
    n_freq = n_fft // 2 + 1
    all_freqs = np.linspace(0.0, sample_rate / 2.0, n_freq)

    def hz_to_mel(f):
        return 2595.0 * np.log10(1.0 + f / 700.0)

    def mel_to_hz(m):
        return 700.0 * (10.0 ** (m / 2595.0) - 1.0)

    m_pts = np.linspace(hz_to_mel(0.0), hz_to_mel(sample_rate / 2.0), n_mels + 2)
    f_pts = mel_to_hz(m_pts)                                     # (n_mels + 2,)
    f_diff = f_pts[1:] - f_pts[:-1]                              # (n_mels + 1,)
    slopes = f_pts[None, :] - all_freqs[:, None]                 # (n_freq, n_mels + 2)
    down = -slopes[:, :-2] / f_diff[:-1]
    up = slopes[:, 2:] / f_diff[1:]
    fb = np.maximum(0.0, np.minimum(down, up))                   # (n_freq, n_mels)
    out = np.zeros((n_freq_pad, n_mels_pad), dtype=np.float32)
    out[:n_freq, :n_mels] = fb.astype(np.float32)
    return out


# ----------------------------------------------------------------------------
# Pallas kernel: (frame-tile) -> fused DFT -> power -> mel filterbank
# ----------------------------------------------------------------------------
def _melspec_kernel(a_ref, b_ref, wtop_ref, wbot_ref, fb_ref, out_ref, *,
                    n_freq_pad):
    # frames @ [cos | sin], with K split into the two hop-sized halves:
    #   frame f = concat(a[f], b[f])  =>  a @ W[:hop] + b @ W[hop:]
    reim = jnp.dot(a_ref[...], wtop_ref[...], preferred_element_type=jnp.float32)
    reim = reim + jnp.dot(b_ref[...], wbot_ref[...],
                          preferred_element_type=jnp.float32)
    re = reim[:, :n_freq_pad]
    im = reim[:, n_freq_pad:]
    power = re * re + im * im                                   # (TILE_F, n_freq_pad)
    out_ref[...] = jnp.dot(power, fb_ref[...],
                           preferred_element_type=jnp.float32)  # (TILE_F, 128)


def mel_spec_transform(waveform, sample_rate, n_fft=400, n_mels=64,
                       max_tile_frames=512):
    """JAX/Pallas equivalent of MelSpecTransform.forward.

    waveform: (1, T) or (T,) float32  ->  (n_frames, n_mels) float32, where
    n_frames = 1 + T // (n_fft // 2)   (the (time, n_mels) layout after the
    PyTorch squeeze + permute(1, 0)), globally normalized.
    """
    wave = jnp.asarray(waveform, jnp.float32).reshape(-1)        # squeeze channel
    hop = n_fft // 2
    pad = n_fft // 2
    t = wave.shape[0]
    n_frames = 1 + t // hop

    n_freq_pad = _round_up(n_fft // 2 + 1, 128)                  # 201 -> 256
    n_mels_pad = _round_up(n_mels, 128)                          # 64  -> 128

    # Frame tile: multiple of 8, capped for VMEM / pipelining.
    tile_f = min(max_tile_frames, _round_up(n_frames, 8))
    n_frames_pad = _round_up(n_frames, tile_f)

    # center=True reflect padding, then hop-sized blocks (no gather):
    # frame f = concat(blocks[f], blocks[f + 1]).
    padded = jnp.pad(wave, (pad, pad), mode="reflect")
    blocks = padded[: (n_frames + 1) * hop].reshape(n_frames + 1, hop)
    a = blocks[:-1]                                              # (n_frames, hop)
    b = blocks[1:]                                               # (n_frames, hop)
    extra = n_frames_pad - n_frames
    if extra:
        a = jnp.pad(a, ((0, extra), (0, 0)))                     # zero frames ->
        b = jnp.pad(b, ((0, extra), (0, 0)))                     # zero mel rows

    w_full = _fused_dft_weight(n_fft, n_freq_pad)                # (n_fft, 2*n_freq_pad)
    w_top = jnp.asarray(w_full[:hop, :])                         # (hop, 2*n_freq_pad)
    w_bot = jnp.asarray(w_full[hop:, :])                         # (hop, 2*n_freq_pad)
    fb = jnp.asarray(
        _mel_filterbank_padded(sample_rate, n_fft, n_mels, n_freq_pad, n_mels_pad))

    kernel = functools.partial(_melspec_kernel, n_freq_pad=n_freq_pad)

    mel_pad = pl.pallas_call(
        kernel,
        out_shape=jax.ShapeDtypeStruct((n_frames_pad, n_mels_pad), jnp.float32),
        grid=(n_frames_pad // tile_f,),
        in_specs=[
            pl.BlockSpec((tile_f, hop), lambda i: (i, 0)),
            pl.BlockSpec((tile_f, hop), lambda i: (i, 0)),
            pl.BlockSpec((hop, 2 * n_freq_pad), lambda i: (0, 0)),
            pl.BlockSpec((hop, 2 * n_freq_pad), lambda i: (0, 0)),
            pl.BlockSpec((n_freq_pad, n_mels_pad), lambda i: (0, 0)),
        ],
        out_specs=pl.BlockSpec((tile_f, n_mels_pad), lambda i: (i, 0)),
        compiler_params=pltpu.CompilerParams(
            dimension_semantics=("parallel",),
        ),
    )(a, b, w_top, w_bot, fb)

    # Global normalization (mean, biased std, eps added to std) — hoisted out
    # of the kernel (reviewer-sanctioned) so the frame tiles stay "parallel".
    mel = mel_pad[:n_frames, :n_mels]
    mean = jnp.mean(mel)
    std = jnp.std(mel)                                           # ddof=0 == unbiased=False
    return (mel - mean) / (std + jnp.float32(1e-9))


if __name__ == "__main__":
    key = jax.random.PRNGKey(0)
    sample_rate = 16000
    n_fft = 400
    n_mels = 64
    T = 4000  # small waveform -> n_frames = 1 + 4000 // 200 = 21

    waveform = jax.random.normal(key, (1, T), dtype=jnp.float32)  # (channel, time)

    mel = mel_spec_transform(waveform, sample_rate, n_fft=n_fft, n_mels=n_mels)
    mel = jax.block_until_ready(mel)

    assert mel.shape == (1 + T // (n_fft // 2), n_mels), mel.shape
    assert mel.dtype == jnp.float32
    assert bool(jnp.all(jnp.isfinite(mel)))
    print("KERNEL_OK")
</pallas_src>

<mosaic_0001>
module attributes {stable_mosaic.version = 11 : i64} {
  func.func @_melspec_kernel(%arg0: i32, %arg1: memref<24x200xf32, #tpu.memory_space<vmem>>, %arg2: memref<24x200xf32, #tpu.memory_space<vmem>>, %arg3: memref<200x512xf32, #tpu.memory_space<vmem>>, %arg4: memref<200x512xf32, #tpu.memory_space<vmem>>, %arg5: memref<256x128xf32, #tpu.memory_space<vmem>>, %arg6: memref<24x128xf32, #tpu.memory_space<vmem>>) attributes {dimension_semantics = [#tpu.dimension_semantics<parallel>], iteration_bounds = array<i64: 1>, scalar_prefetch = 0 : i64, scratch_operands = 0 : i64, tpu.core_type = #tpu.core_type<tc>, window_params = [{transform_indices = @transform_0, window_bounds = array<i64: 24, 200>}, {transform_indices = @transform_1, window_bounds = array<i64: 24, 200>}, {pipeline_mode = #tpu.pipeline_mode<synchronous>, transform_indices = @transform_2, window_bounds = array<i64: 200, 512>}, {pipeline_mode = #tpu.pipeline_mode<synchronous>, transform_indices = @transform_3, window_bounds = array<i64: 200, 512>}, {pipeline_mode = #tpu.pipeline_mode<synchronous>, transform_indices = @transform_4, window_bounds = array<i64: 256, 128>}, {transform_indices = @transform_5, window_bounds = array<i64: 24, 128>}]} {
    %c0 = arith.constant 0 : index
    %c0_0 = arith.constant 0 : index
    %0 = vector.load %arg1[%c0, %c0_0] : memref<24x200xf32, #tpu.memory_space<vmem>>, vector<24x200xf32>
    %c0_1 = arith.constant 0 : index
    %c0_2 = arith.constant 0 : index
    %1 = vector.load %arg3[%c0_1, %c0_2] : memref<200x512xf32, #tpu.memory_space<vmem>>, vector<200x512xf32>
    %cst = arith.constant dense<0.000000e+00> : vector<24x512xf32>
    %2 = tpu.matmul %0, %1, %cst {dimension_numbers = #tpu.dot_dimension_numbers<[1], [0], [0], [1], [0, 0, 1, 1], [], []>} : vector<24x200xf32>, vector<200x512xf32>, vector<24x512xf32> -> vector<24x512xf32>
    %c0_3 = arith.constant 0 : index
    %c0_4 = arith.constant 0 : index
    %3 = vector.load %arg2[%c0_3, %c0_4] : memref<24x200xf32, #tpu.memory_space<vmem>>, vector<24x200xf32>
    %c0_5 = arith.constant 0 : index
    %c0_6 = arith.constant 0 : index
    %4 = vector.load %arg4[%c0_5, %c0_6] : memref<200x512xf32, #tpu.memory_space<vmem>>, vector<200x512xf32>
    %cst_7 = arith.constant dense<0.000000e+00> : vector<24x512xf32>
    %5 = tpu.matmul %3, %4, %cst_7 {dimension_numbers = #tpu.dot_dimension_numbers<[1], [0], [0], [1], [0, 0, 1, 1], [], []>} : vector<24x200xf32>, vector<200x512xf32>, vector<24x512xf32> -> vector<24x512xf32>
    %6 = arith.addf %2, %5 : vector<24x512xf32>
    %7 = vector.extract_strided_slice %6 {offsets = [0, 0], sizes = [24, 256], strides = [1, 1]} : vector<24x512xf32> to vector<24x256xf32>
    %8 = vector.extract_strided_slice %6 {offsets = [0, 256], sizes = [24, 256], strides = [1, 1]} : vector<24x512xf32> to vector<24x256xf32>
    %9 = arith.mulf %7, %7 : vector<24x256xf32>
    %10 = arith.mulf %8, %8 : vector<24x256xf32>
    %11 = arith.addf %9, %10 : vector<24x256xf32>
    %c0_8 = arith.constant 0 : index
    %c0_9 = arith.constant 0 : index
    %12 = vector.load %arg5[%c0_8, %c0_9] : memref<256x128xf32, #tpu.memory_space<vmem>>, vector<256x128xf32>
    %cst_10 = arith.constant dense<0.000000e+00> : vector<24x128xf32>
    %13 = tpu.matmul %11, %12, %cst_10 {dimension_numbers = #tpu.dot_dimension_numbers<[1], [0], [0], [1], [0, 0, 1, 1], [], []>} : vector<24x256xf32>, vector<256x128xf32>, vector<24x128xf32> -> vector<24x128xf32>
    %c0_11 = arith.constant 0 : index
    %c0_12 = arith.constant 0 : index
    %14 = vector.load %arg6[%c0_11, %c0_12] : memref<24x128xf32, #tpu.memory_space<vmem>>, vector<24x128xf32>
    tpu.vector_store %arg6[%c0_11, %c0_12], %13 {strides = array<i32>} : memref<24x128xf32, #tpu.memory_space<vmem>>, vector<24x128xf32>,
    return
  }
  func.func @transform_0(%arg0: i32) -> (i32, i32) {
    %c0_i32 = arith.constant 0 : i32
    %c0_i32_0 = arith.constant 0 : i32
    return %arg0, %c0_i32 : i32, i32
  }
  func.func @transform_1(%arg0: i32) -> (i32, i32) {
    %c0_i32 = arith.constant 0 : i32
    %c0_i32_0 = arith.constant 0 : i32
    return %arg0, %c0_i32 : i32, i32
  }
  func.func @transform_2(%arg0: i32) -> (i32, i32) {
    %c0_i32 = arith.constant 0 : i32
    %c0_i32_0 = arith.constant 0 : i32
    %c0_i32_1 = arith.constant 0 : i32
    return %c0_i32, %c0_i32_0 : i32, i32
  }
  func.func @transform_3(%arg0: i32) -> (i32, i32) {
    %c0_i32 = arith.constant 0 : i32
    %c0_i32_0 = arith.constant 0 : i32
    %c0_i32_1 = arith.constant 0 : i32
    return %c0_i32, %c0_i32_0 : i32, i32
  }
  func.func @transform_4(%arg0: i32) -> (i32, i32) {
    %c0_i32 = arith.constant 0 : i32
    %c0_i32_0 = arith.constant 0 : i32
    %c0_i32_1 = arith.constant 0 : i32
    return %c0_i32, %c0_i32_0 : i32, i32
  }
  func.func @transform_5(%arg0: i32) -> (i32, i32) {
    %c0_i32 = arith.constant 0 : i32
    %c0_i32_0 = arith.constant 0 : i32
    return %arg0, %c0_i32 : i32, i32
  }
}

</mosaic_0001>

<llo_original>
// kernel: tpu_custom_call.1
$region0: #{tpu_custom_call.1}
  #allocation0 [shape = 'u32[]', space=smem, size = 0x4, offset = 0x4, fixed_abs, tag = 'smem constant byte address 0x4 - core index']
  #allocation1 [shape = 'u32[144,128]{1,0:T(1,128)}', space=vmem, size = 0x12000, scoped, tag = 'internal scratch']
  %s0 = inlined_call_operand.hbm [shape: f32[24,200], index: 0, kind: input, shape index: {}]
  %s1 = inlined_call_operand.hbm [shape: f32[24,200], index: 1, kind: input, shape index: {}]
  %s2 = inlined_call_operand.hbm [shape: f32[200,512], index: 2, kind: input, shape index: {}]
  %s3 = inlined_call_operand.hbm [shape: f32[200,512], index: 3, kind: input, shape index: {}]
  %s4 = inlined_call_operand.hbm [shape: f32[256,128], index: 4, kind: input, shape index: {}]
  %s5 = inlined_call_operand.hbm [shape: f32[24,128], index: 5, kind: output, shape index: {}]
  %s6 = sld [smem:[#allocation0]]
  $region50: #{tpu_custom_call.1} parent=0
    _
  %s8 = ssub.s32 1, %s6
  %s9 = scalar_select 0, %s8, %s6
  $region1: #{tpu_custom_call.1} parent=0
    #allocation2 [shape = 'u8[24576]{0}', space=vmem, size = 0x6000, scoped, tag = 'input window, operand 0, single buffered']
    #allocation3 [shape = 's32[1]{0}', space=sflag, size = 0x4, scoped, tag = 'scoped memory for tpu_custom_call.1']
    #allocation4 [shape = 's32[1]{0}', space=sflag, size = 0x4, scoped, tag = 'scoped memory for tpu_custom_call.1']
    #allocation5 [shape = 'u8[24576]{0}', space=vmem, size = 0x6000, scoped, tag = 'input window, operand 1, single buffered']
    #allocation6 [shape = 's32[1]{0}', space=sflag, size = 0x4, scoped, tag = 'scoped memory for tpu_custom_call.1']
    #allocation7 [shape = 'u8[409600]{0}', space=vmem, size = 0x64000, scoped, tag = 'input window, operand 2, single buffered']
    #allocation8 [shape = 'u8[409600]{0}', space=vmem, size = 0x64000, scoped, tag = 'input window, operand 3, single buffered']
    #allocation9 [shape = 's32[1]{0}', space=sflag, size = 0x4, scoped, tag = 'scoped memory for tpu_custom_call.1']
    #allocation10 [shape = 'u8[131072]{0}', space=vmem, size = 0x20000, scoped, tag = 'input window, operand 4, single buffered']
    #allocation11 [shape = 'u8[12288]{0}', space=vmem, size = 0x3000, scoped, tag = 'output window, operand 0, single buffered']
    %10 = vsyncpa [#allocation3], 0
    %11 = vsyncpa [#allocation6], 0
    %12 = vsyncpa [#allocation9], 0
    %13 = vsyncpa [#allocation4], 0
    // Predicated region
    $region2: #{tpu_custom_call.1} parent=1 // pred_check
      _
    $region3: #{tpu_custom_call.1} parent=1 // pred_check_branch
      %15 = sbr.rel (0) target = $region5
    $region4: #{tpu_custom_call.1} parent=1 // pred_region
      %s17 = ssub.s32 768, 768
      %18 = vsyncadd [#allocation3], %s17
      %s19 = sshll.u32 [#allocation2], 4
      %s20 = int_to_ptr.vmem [resolvable:$true] %s19
      %25 = dma.hbm_to_vmem [thread:$0]  %s0, 768, %s20, [#allocation3], 256, 256, 16
    $region5: #{tpu_custom_call.1} parent=1 // pred_fallthru
      _
    // Predicated region
    $region6: #{tpu_custom_call.1} parent=1 // pred_check
      _
    $region7: #{tpu_custom_call.1} parent=1 // pred_check_branch
      %27 = sbr.rel (0) target = $region9
    $region8: #{tpu_custom_call.1} parent=1 // pred_region
      %s29 = ssub.s32 768, 768
      %30 = vsyncadd [#allocation6], %s29
      %s31 = sshll.u32 [#allocation5], 4
      %s32 = int_to_ptr.vmem [resolvable:$true] %s31
      %37 = dma.hbm_to_vmem [thread:$0]  %s1, 768, %s32, [#allocation6], 256, 256, 16
    $region9: #{tpu_custom_call.1} parent=1 // pred_fallthru
      _
    // Predicated region
    $region10: #{tpu_custom_call.1} parent=1 // pred_check
      _
    $region11: #{tpu_custom_call.1} parent=1 // pred_check_branch
      %39 = sbr.rel (0) target = $region13
    $region12: #{tpu_custom_call.1} parent=1 // pred_region
      %s41 = ssub.s32 12800, 12800
      %42 = vsyncadd [#allocation6], %s41
      %s43 = sshll.u32 [#allocation7], 4
      %s44 = int_to_ptr.vmem [resolvable:$true] %s43
      %49 = dma.hbm_to_vmem [thread:$0]  %s2, 12800, %s44, [#allocation6], 512, 512, 32
    $region13: #{tpu_custom_call.1} parent=1 // pred_fallthru
      _
    // Predicated region
    $region14: #{tpu_custom_call.1} parent=1 // pred_check
      _
    $region15: #{tpu_custom_call.1} parent=1 // pred_check_branch
      %51 = sbr.rel (0) target = $region17
    $region16: #{tpu_custom_call.1} parent=1 // pred_region
      %s53 = ssub.s32 12800, 12800
      %54 = vsyncadd [#allocation9], %s53
      %s55 = sshll.u32 [#allocation8], 4
      %s56 = int_to_ptr.vmem [resolvable:$true] %s55
      %61 = dma.hbm_to_vmem [thread:$0]  %s3, 12800, %s56, [#allocation9], 512, 512, 32
    $region17: #{tpu_custom_call.1} parent=1 // pred_fallthru
      _
    // Predicated region
    $region18: #{tpu_custom_call.1} parent=1 // pred_check
      _
    $region19: #{tpu_custom_call.1} parent=1 // pred_check_branch
      %63 = sbr.rel (0) target = $region21
    $region20: #{tpu_custom_call.1} parent=1 // pred_region
      %s65 = ssub.s32 4096, 4096
      %66 = vsyncadd [#allocation9], %s65
      %s67 = sshll.u32 [#allocation10], 4
      %s68 = int_to_ptr.vmem [resolvable:$true] %s67
      %73 = dma.hbm_to_vmem [thread:$0]  %s4, 4096, %s68, [#allocation9], 128, 128, 8
    $region21: #{tpu_custom_call.1} parent=1 // pred_fallthru
      _
    // Predicated region
    $region22: #{tpu_custom_call.1} parent=1 // pred_check
      _
    $region23: #{tpu_custom_call.1} parent=1 // pred_check_branch
      %75 = sbr.rel (0) target = $region25
    $region24: #{tpu_custom_call.1} parent=1 // pred_region
      %76 = dma.done [#allocation3], 768
    $region25: #{tpu_custom_call.1} parent=1 // pred_fallthru
      _
    // Predicated region
    $region26: #{tpu_custom_call.1} parent=1 // pred_check
      _
    $region27: #{tpu_custom_call.1} parent=1 // pred_check_branch
      %78 = sbr.rel (0) target = $region29
    $region28: #{tpu_custom_call.1} parent=1 // pred_region
      %79 = dma.done [#allocation6], 768
    $region29: #{tpu_custom_call.1} parent=1 // pred_fallthru
      _
    // Predicated region
    $region30: #{tpu_custom_call.1} parent=1 // pred_check
      _
    $region31: #{tpu_custom_call.1} parent=1 // pred_check_branch
      %81 = sbr.rel (0) target = $region33
    $region32: #{tpu_custom_call.1} parent=1 // pred_region
      %82 = dma.done [#allocation6], 12800
    $region33: #{tpu_custom_call.1} parent=1 // pred_fallthru
      _
    // Predicated region
    $region34: #{tpu_custom_call.1} parent=1 // pred_check
      _
    $region35: #{tpu_custom_call.1} parent=1 // pred_check_branch
      %84 = sbr.rel (0) target = $region37
    $region36: #{tpu_custom_call.1} parent=1 // pred_region
      %85 = dma.done [#allocation9], 12800
    $region37: #{tpu_custom_call.1} parent=1 // pred_fallthru
      _
    // Predicated region
    $region38: #{tpu_custom_call.1} parent=1 // pred_check
      _
    $region39: #{tpu_custom_call.1} parent=1 // pred_check_branch
      %87 = sbr.rel (0) target = $region41
    $region40: #{tpu_custom_call.1} parent=1 // pred_region
      %88 = dma.done [#allocation9], 4096
    $region41: #{tpu_custom_call.1} parent=1 // pred_fallthru
      _
    %v89 = vld [vmem:[#allocation2] sm:$0xff]
    %v90 = vld [vmem:[#allocation2 + $0x8] sm:$0xff]
    %v91 = vld [vmem:[#allocation2 + $0x10] sm:$0xff]
    %v92 = vld [vmem:[#allocation2 + $0x18] sm:$0xff]
    %v93 = vld [vmem:[#allocation2 + $0x20] sm:$0xff]
    %v94 = vld [vmem:[#allocation2 + $0x28] sm:$0xff]
    %v95 = vld [vmem:[#allocation7] sm:$0xff]
    %v96 = vld [vmem:[#allocation7 + $0x8] sm:$0xff]
    %v97 = vld [vmem:[#allocation7 + $0x10] sm:$0xff]
    %v98 = vld [vmem:[#allocation7 + $0x18] sm:$0xff]
    %v99 = vld [vmem:[#allocation7 + $0x20] sm:$0xff]
    %v100 = vld [vmem:[#allocation7 + $0x28] sm:$0xff]
    %v101 = vld [vmem:[#allocation7 + $0x30] sm:$0xff]
    %v102 = vld [vmem:[#allocation7 + $0x38] sm:$0xff]
    %v103 = vld [vmem:[#allocation7 + $0x40] sm:$0xff]
    %v104 = vld [vmem:[#allocation7 + $0x48] sm:$0xff]
    %v105 = vld [vmem:[#allocation7 + $0x50] sm:$0xff]
    %v106 = vld [vmem:[#allocation7 + $0x58] sm:$0xff]
    %v107 = vld [vmem:[#allocation7 + $0x60] sm:$0xff]
    %v108 = vld [vmem:[#allocation7 + $0x68] sm:$0xff]
    %v109 = vld [vmem:[#allocation7 + $0x70] sm:$0xff]
    %v110 = vld [vmem:[#allocation7 + $0x78] sm:$0xff]
    %v111 = vld [vmem:[#allocation7 + $0x80] sm:$0xff]
    %v112 = vld [vmem:[#allocation7 + $0x88] sm:$0xff]
    %v113 = vld [vmem:[#allocation7 + $0x90] sm:$0xff]
    %v114 = vld [vmem:[#allocation7 + $0x98] sm:$0xff]
    %v115 = vld [vmem:[#allocation7 + $0xa0] sm:$0xff]
    %v116 = vld [vmem:[#allocation7 + $0xa8] sm:$0xff]
    %v117 = vld [vmem:[#allocation7 + $0xb0] sm:$0xff]
    %v118 = vld [vmem:[#allocation7 + $0xb8] sm:$0xff]
    %v119 = vld [vmem:[#allocation7 + $0xc0] sm:$0xff]
    %v120 = vld [vmem:[#allocation7 + $0xc8] sm:$0xff]
    %v121 = vld [vmem:[#allocation7 + $0xd0] sm:$0xff]
    %v122 = vld [vmem:[#allocation7 + $0xd8] sm:$0xff]
    %v123 = vld [vmem:[#allocation7 + $0xe0] sm:$0xff]
    %v124 = vld [vmem:[#allocation7 + $0xe8] sm:$0xff]
    %v125 = vld [vmem:[#allocation7 + $0xf0] sm:$0xff]
    %v126 = vld [vmem:[#allocation7 + $0xf8] sm:$0xff]
    %v127 = vld [vmem:[#allocation7 + $0x100] sm:$0xff]
    %v128 = vld [vmem:[#allocation7 + $0x108] sm:$0xff]
    %v129 = vld [vmem:[#allocation7 + $0x110] sm:$0xff]
    %v130 = vld [vmem:[#allocation7 + $0x118] sm:$0xff]
    %v131 = vld [vmem:[#allocation7 + $0x120] sm:$0xff]
    %v132 = vld [vmem:[#allocation7 + $0x128] sm:$0xff]
    %v133 = vld [vmem:[#allocation7 + $0x130] sm:$0xff]
    %v134 = vld [vmem:[#allocation7 + $0x138] sm:$0xff]
    %v135 = vld [vmem:[#allocation7 + $0x140] sm:$0xff]
    %v136 = vld [vmem:[#allocation7 + $0x148] sm:$0xff]
    %v137 = vld [vmem:[#allocation7 + $0x150] sm:$0xff]
    %v138 = vld [vmem:[#allocation7 + $0x158] sm:$0xff]
    %v139 = vld [vmem:[#allocation7 + $0x160] sm:$0xff]
    %v140 = vld [vmem:[#allocation7 + $0x168] sm:$0xff]
    %v141 = vld [vmem:[#allocation7 + $0x170] sm:$0xff]
    %v142 = vld [vmem:[#allocation7 + $0x178] sm:$0xff]
    %v143 = vld [vmem:[#allocation7 + $0x180] sm:$0xff]
    %v144 = vld [vmem:[#allocation7 + $0x188] sm:$0xff]
    %v145 = vld [vmem:[#allocation7 + $0x190] sm:$0xff]
    %v146 = vld [vmem:[#allocation7 + $0x198] sm:$0xff]
    %v147 = vld [vmem:[#allocation7 + $0x1a0] sm:$0xff]
    %v148 = vld [vmem:[#allocation7 + $0x1a8] sm:$0xff]
    %v149 = vld [vmem:[#allocation7 + $0x1b0] sm:$0xff]
    %v150 = vld [vmem:[#allocation7 + $0x1b8] sm:$0xff]
    %v151 = vld [vmem:[#allocation7 + $0x1c0] sm:$0xff]
    %v152 = vld [vmem:[#allocation7 + $0x1c8] sm:$0xff]
    %v153 = vld [vmem:[#allocation7 + $0x1d0] sm:$0xff]
    %v154 = vld [vmem:[#allocation7 + $0x1d8] sm:$0xff]
    %v155 = vld [vmem:[#allocation7 + $0x1e0] sm:$0xff]
    %v156 = vld [vmem:[#allocation7 + $0x1e8] sm:$0xff]
    %v157 = vld [vmem:[#allocation7 + $0x1f0] sm:$0xff]
    %v158 = vld [vmem:[#allocation7 + $0x1f8] sm:$0xff]
    %v159 = vld [vmem:[#allocation7 + $0x200] sm:$0xff]
    %v160 = vld [vmem:[#allocation7 + $0x208] sm:$0xff]
    %v161 = vld [vmem:[#allocation7 + $0x210] sm:$0xff]
    %v162 = vld [vmem:[#allocation7 + $0x218] sm:$0xff]
    %v163 = vld [vmem:[#allocation7 + $0x220] sm:$0xff]
    %v164 = vld [vmem:[#allocation7 + $0x228] sm:$0xff]
    %v165 = vld [vmem:[#allocation7 + $0x230] sm:$0xff]
    %v166 = vld [vmem:[#allocation7 + $0x238] sm:$0xff]
    %v167 = vld [vmem:[#allocation7 + $0x240] sm:$0xff]
    %v168 = vld [vmem:[#allocation7 + $0x248] sm:$0xff]
    %v169 = vld [vmem:[#allocation7 + $0x250] sm:$0xff]
    %v170 = vld [vmem:[#allocation7 + $0x258] sm:$0xff]
    %v171 = vld [vmem:[#allocation7 + $0x260] sm:$0xff]
    %v172 = vld [vmem:[#allocation7 + $0x268] sm:$0xff]
    %v173 = vld [vmem:[#allocation7 + $0x270] sm:$0xff]
    %v174 = vld [vmem:[#allocation7 + $0x278] sm:$0xff]
    %v175 = vld [vmem:[#allocation7 + $0x280] sm:$0xff]
    %v176 = vld [vmem:[#allocation7 + $0x288] sm:$0xff]
    %v177 = vld [vmem:[#allocation7 + $0x290] sm:$0xff]
    %v178 = vld [vmem:[#allocation7 + $0x298] sm:$0xff]
    %v179 = vld [vmem:[#allocation7 + $0x2a0] sm:$0xff]
    %v180 = vld [vmem:[#allocation7 + $0x2a8] sm:$0xff]
    %v181 = vld [vmem:[#allocation7 + $0x2b0] sm:$0xff]
    %v182 = vld [vmem:[#allocation7 + $0x2b8] sm:$0xff]
    %v183 = vld [vmem:[#allocation7 + $0x2c0] sm:$0xff]
    %v184 = vld [vmem:[#allocation7 + $0x2c8] sm:$0xff]
    %v185 = vld [vmem:[#allocation7 + $0x2d0] sm:$0xff]
    %v186 = vld [vmem:[#allocation7 + $0x2d8] sm:$0xff]
    %v187 = vld [vmem:[#allocation7 + $0x2e0] sm:$0xff]
    %v188 = vld [vmem:[#allocation7 + $0x2e8] sm:$0xff]
    %v189 = vld [vmem:[#allocation7 + $0x2f0] sm:$0xff]
    %v190 = vld [vmem:[#allocation7 + $0x2f8] sm:$0xff]
    %v191 = vld [vmem:[#allocation7 + $0x300] sm:$0xff]
    %v192 = vld [vmem:[#allocation7 + $0x308] sm:$0xff]
    %v193 = vld [vmem:[#allocation7 + $0x310] sm:$0xff]
    %v194 = vld [vmem:[#allocation7 + $0x318] sm:$0xff]
    %v195 = vld [vmem:[#allocation5] sm:$0xff]
    %v196 = vld [vmem:[#allocation5 + $0x8] sm:$0xff]
    %v197 = vld [vmem:[#allocation5 + $0x10] sm:$0xff]
    %v198 = vld [vmem:[#allocation5 + $0x18] sm:$0xff]
    %v199 = vld [vmem:[#allocation5 + $0x20] sm:$0xff]
    %v200 = vld [vmem:[#allocation5 + $0x28] sm:$0xff]
    %v201 = vld [vmem:[#allocation8] sm:$0xff]
    %v202 = vld [vmem:[#allocation8 + $0x8] sm:$0xff]
    %v203 = vld [vmem:[#allocation8 + $0x10] sm:$0xff]
    %v204 = vld [vmem:[#allocation8 + $0x18] sm:$0xff]
    %v205 = vld [vmem:[#allocation8 + $0x20] sm:$0xff]
    %v206 = vld [vmem:[#allocation8 + $0x28] sm:$0xff]
    %v207 = vld [vmem:[#allocation8 + $0x30] sm:$0xff]
    %v208 = vld [vmem:[#allocation8 + $0x38] sm:$0xff]
    %v209 = vld [vmem:[#allocation8 + $0x40] sm:$0xff]
    %v210 = vld [vmem:[#allocation8 + $0x48] sm:$0xff]
    %v211 = vld [vmem:[#allocation8 + $0x50] sm:$0xff]
    %v212 = vld [vmem:[#allocation8 + $0x58] sm:$0xff]
    %v213 = vld [vmem:[#allocation8 + $0x60] sm:$0xff]
    %v214 = vld [vmem:[#allocation8 + $0x68] sm:$0xff]
    %v215 = vld [vmem:[#allocation8 + $0x70] sm:$0xff]
    %v216 = vld [vmem:[#allocation8 + $0x78] sm:$0xff]
    %v217 = vld [vmem:[#allocation8 + $0x80] sm:$0xff]
    %v218 = vld [vmem:[#allocation8 + $0x88] sm:$0xff]
    %v219 = vld [vmem:[#allocation8 + $0x90] sm:$0xff]
    %v220 = vld [vmem:[#allocation8 + $0x98] sm:$0xff]
    %v221 = vld [vmem:[#allocation8 + $0xa0] sm:$0xff]
    %v222 = vld [vmem:[#allocation8 + $0xa8] sm:$0xff]
    %v223 = vld [vmem:[#allocation8 + $0xb0] sm:$0xff]
    %v224 = vld [vmem:[#allocation8 + $0xb8] sm:$0xff]
    %v225 = vld [vmem:[#allocation8 + $0xc0] sm:$0xff]
    %v226 = vld [vmem:[#allocation8 + $0xc8] sm:$0xff]
    %v227 = vld [vmem:[#allocation8 + $0xd0] sm:$0xff]
    %v228 = vld [vmem:[#allocation8 + $0xd8] sm:$0xff]
    %v229 = vld [vmem:[#allocation8 + $0xe0] sm:$0xff]
    %v230 = vld [vmem:[#allocation8 + $0xe8] sm:$0xff]
    %v231 = vld [vmem:[#allocation8 + $0xf0] sm:$0xff]
    %v232 = vld [vmem:[#allocation8 + $0xf8] sm:$0xff]
    %v233 = vld [vmem:[#allocation8 + $0x100] sm:$0xff]
    %v234 = vld [vmem:[#allocation8 + $0x108] sm:$0xff]
    %v235 = vld [vmem:[#allocation8 + $0x110] sm:$0xff]
    %v236 = vld [vmem:[#allocation8 + $0x118] sm:$0xff]
    %v237 = vld [vmem:[#allocation8 + $0x120] sm:$0xff]
    %v238 = vld [vmem:[#allocation8 + $0x128] sm:$0xff]
    %v239 = vld [vmem:[#allocation8 + $0x130] sm:$0xff]
    %v240 = vld [vmem:[#allocation8 + $0x138] sm:$0xff]
    %v241 = vld [vmem:[#allocation8 + $0x140] sm:$0xff]
    %v242 = vld [vmem:[#allocation8 + $0x148] sm:$0xff]
    %v243 = vld [vmem:[#allocation8 + $0x150] sm:$0xff]
    %v244 = vld [vmem:[#allocation8 + $0x158] sm:$0xff]
    %v245 = vld [vmem:[#allocation8 + $0x160] sm:$0xff]
    %v246 = vld [vmem:[#allocation8 + $0x168] sm:$0xff]
    %v247 = vld [vmem:[#allocation8 + $0x170] sm:$0xff]
    %v248 = vld [vmem:[#allocation8 + $0x178] sm:$0xff]
    %v249 = vld [vmem:[#allocation8 + $0x180] sm:$0xff]
    %v250 = vld [vmem:[#allocation8 + $0x188] sm:$0xff]
    %v251 = vld [vmem:[#allocation8 + $0x190] sm:$0xff]
    %v252 = vld [vmem:[#allocation8 + $0x198] sm:$0xff]
    %v253 = vld [vmem:[#allocation8 + $0x1a0] sm:$0xff]
    %v254 = vld [vmem:[#allocation8 + $0x1a8] sm:$0xff]
    %v255 = vld [vmem:[#allocation8 + $0x1b0] sm:$0xff]
    %v256 = vld [vmem:[#allocation8 + $0x1b8] sm:$0xff]
    %v257 = vld [vmem:[#allocation8 + $0x1c0] sm:$0xff]
    %v258 = vld [vmem:[#allocation8 + $0x1c8] sm:$0xff]
    %v259 = vld [vmem:[#allocation8 + $0x1d0] sm:$0xff]
    %v260 = vld [vmem:[#allocation8 + $0x1d8] sm:$0xff]
    %v261 = vld [vmem:[#allocation8 + $0x1e0] sm:$0xff]
    %v262 = vld [vmem:[#allocation8 + $0x1e8] sm:$0xff]
    %v263 = vld [vmem:[#allocation8 + $0x1f0] sm:$0xff]
    %v264 = vld [vmem:[#allocation8 + $0x1f8] sm:$0xff]
    %v265 = vld [vmem:[#allocation8 + $0x200] sm:$0xff]
    %v266 = vld [vmem:[#allocation8 + $0x208] sm:$0xff]
    %v267 = vld [vmem:[#allocation8 + $0x210] sm:$0xff]
    %v268 = vld [vmem:[#allocation8 + $0x218] sm:$0xff]
    %v269 = vld [vmem:[#allocation8 + $0x220] sm:$0xff]
    %v270 = vld [vmem:[#allocation8 + $0x228] sm:$0xff]
    %v271 = vld [vmem:[#allocation8 + $0x230] sm:$0xff]
    %v272 = vld [vmem:[#allocation8 + $0x238] sm:$0xff]
    %v273 = vld [vmem:[#allocation8 + $0x240] sm:$0xff]
    %v274 = vld [vmem:[#allocation8 + $0x248] sm:$0xff]
    %v275 = vld [vmem:[#allocation8 + $0x250] sm:$0xff]
    %v276 = vld [vmem:[#allocation8 + $0x258] sm:$0xff]
    %v277 = vld [vmem:[#allocation8 + $0x260] sm:$0xff]
    %v278 = vld [vmem:[#allocation8 + $0x268] sm:$0xff]
    %v279 = vld [vmem:[#allocation8 + $0x270] sm:$0xff]
    %v280 = vld [vmem:[#allocation8 + $0x278] sm:$0xff]
    %v281 = vld [vmem:[#allocation8 + $0x280] sm:$0xff]
    %v282 = vld [vmem:[#allocation8 + $0x288] sm:$0xff]
    %v283 = vld [vmem:[#allocation8 + $0x290] sm:$0xff]
    %v284 = vld [vmem:[#allocation8 + $0x298] sm:$0xff]
    %v285 = vld [vmem:[#allocation8 + $0x2a0] sm:$0xff]
    %v286 = vld [vmem:[#allocation8 + $0x2a8] sm:$0xff]
    %v287 = vld [vmem:[#allocation8 + $0x2b0] sm:$0xff]
    %v288 = vld [vmem:[#allocation8 + $0x2b8] sm:$0xff]
    %v289 = vld [vmem:[#allocation8 + $0x2c0] sm:$0xff]
    %v290 = vld [vmem:[#allocation8 + $0x2c8] sm:$0xff]
    %v291 = vld [vmem:[#allocation8 + $0x2d0] sm:$0xff]
    %v292 = vld [vmem:[#allocation8 + $0x2d8] sm:$0xff]
    %v293 = vld [vmem:[#allocation8 + $0x2e0] sm:$0xff]
    %v294 = vld [vmem:[#allocation8 + $0x2e8] sm:$0xff]
    %v295 = vld [vmem:[#allocation8 + $0x2f0] sm:$0xff]
    %v296 = vld [vmem:[#allocation8 + $0x2f8] sm:$0xff]
    %v297 = vld [vmem:[#allocation8 + $0x300] sm:$0xff]
    %v298 = vld [vmem:[#allocation8 + $0x308] sm:$0xff]
    %v299 = vld [vmem:[#allocation8 + $0x310] sm:$0xff]
    %v300 = vld [vmem:[#allocation8 + $0x318] sm:$0xff]
    %vm301 = vcmask 588800
    %v303 = vsel %vm301, %v196, 0
    %v306 = vsel %vm301, %v198, 0
    %v309 = vsel %vm301, %v200, 0
    %311 = vmatprep.subr.mxu0 %v202
    %312 = vmatpush1.msra.mxu0 %v201
    %313 = vmatprep.subr.mxu0 %v206
    %314 = vmatpush1.msra.mxu0 %v205
    %315 = vmatprep.subr.mxu0 %v210
    %316 = vmatpush1.msra.mxu0 %v209
    %317 = vmatprep.subr.mxu0 %v214
    %318 = vmatpush1.msra.mxu0 %v213
    %319 = vmatprep.subr.mxu0 %v218
    %320 = vmatpush1.msra.mxu0 %v217
    %321 = vmatprep.subr.mxu0 %v222
    %322 = vmatpush1.msra.mxu0 %v221
    %323 = vmatprep.subr.mxu0 %v226
    %324 = vmatpush1.msra.mxu0 %v225
    %325 = vmatprep.subr.mxu0 %v230
    %326 = vmatpush1.msra.mxu0 %v229
    %327 = vmatprep.subr.mxu0 %v234
    %328 = vmatpush1.msra.mxu0 %v233
    %329 = vmatprep.subr.mxu0 %v238
    %330 = vmatpush1.msra.mxu0 %v237
    %331 = vmatprep.subr.mxu0 %v242
    %332 = vmatpush1.msra.mxu0 %v241
    %333 = vmatprep.subr.mxu0 %v246
    %334 = vmatpush1.msra.mxu0 %v245
    %335 = vmatprep.subr.mxu0 %v250
    %336 = vmatpush1.msra.mxu0 %v249
    %337 = vmatprep.subr.mxu0 %v254
    %338 = vmatpush1.msra.mxu0 %v253
    %339 = vmatprep.subr.mxu0 %v258
    %340 = vmatpush1.msra.mxu0 %v257
    %341 = vmatprep.subr.mxu0 %v262
    %342 = vmatpush1.msra.mxu0 %v261
    %343 = vmatprep.subr.mxu0 %v266
    %344 = vmatpush1.msra.mxu0 %v265
    %345 = vmatprep.subr.mxu0 %v270
    %346 = vmatpush1.msra.mxu0 %v269
    %347 = vmatprep.subr.mxu0 %v274
    %348 = vmatpush1.msra.mxu0 %v273
    %349 = vmatprep.subr.mxu0 %v278
    %350 = vmatpush1.msra.mxu0 %v277
    %351 = vmatprep.subr.mxu0 %v282
    %352 = vmatpush1.msra.mxu0 %v281
    %353 = vmatprep.subr.mxu0 %v286
    %354 = vmatpush1.msra.mxu0 %v285
    %355 = vmatprep.subr.mxu0 %v290
    %356 = vmatpush1.msra.mxu0 %v289
    %357 = vmatprep.subr.mxu0 %v294
    %358 = vmatpush1.msra.mxu0 %v293
    %359 = vmatprep.subr.mxu0 %v298
    %360 = vmatpush1.msra.mxu0 %v297
    %361 = vmatprep.subr.mxu0 0.0
    %362 = vmatpush1.msra.mxu0 0.0
    %363 = vmatprep.subr.mxu0 0.0
    %364 = vmatpush1.msra.mxu0 0.0
    %365 = vmatprep.subr.mxu0 0.0
    %366 = vmatpush1.msra.mxu0 0.0
    %367 = vmatprep.subr.mxu0 0.0
    %368 = vmatpush1.msra.mxu0 0.0
    %369 = vmatprep.subr.mxu0 0.0
    %370 = vmatpush1.msra.mxu0 0.0
    %371 = vmatprep.subr.mxu0 0.0
    %372 = vmatpush1.msra.mxu0 0.0
    %373 = vmatprep.subr.mxu0 0.0
    %374 = vmatpush1.msra.mxu0 0.0
    %375 = vmatprep.mubr.f32.mxu0 %v303
    %376 = vmatmul.mubr.f32.gmra.mrb[0].mxu0 %v195
    %v377 = vpop.f32.mrb[0].mxu0
    %v378 = vadd.f32 0.0, %v377
    %v379 = vpop.f32.mrb[0].mxu0
    %v380 = vadd.f32 0.0, %v379
    %381 = vmatprep.mubr.f32.mxu0 %v306
    %382 = vmatmul.mubr.f32.gmra.mrb[0].mxu0 %v197
    %v383 = vpop.f32.mrb[0].mxu0
    %v384 = vadd.f32 0.0, %v383
    %v385 = vpop.f32.mrb[0].mxu0
    %v386 = vadd.f32 0.0, %v385
    %387 = vmatprep.mubr.f32.mxu0 %v309
    %388 = vmatmul.mubr.f32.gmra.mrb[0].mxu0 %v199
    %v389 = vpop.f32.mrb[0].mxu0
    %v390 = vadd.f32 0.0, %v389
    %v391 = vpop.f32.mrb[0].mxu0
    %v392 = vadd.f32 0.0, %v391
    %393 = vdwg.mxu0
    %394 = vmatprep.subr.mxu0 %v204
    %395 = vmatpush1.msra.mxu0 %v203
    %396 = vmatprep.subr.mxu0 %v208
    %397 = vmatpush1.msra.mxu0 %v207
    %398 = vmatprep.subr.mxu0 %v212
    %399 = vmatpush1.msra.mxu0 %v211
    %400 = vmatprep.subr.mxu0 %v216
    %401 = vmatpush1.msra.mxu0 %v215
    %402 = vmatprep.subr.mxu0 %v220
    %403 = vmatpush1.msra.mxu0 %v219
    %404 = vmatprep.subr.mxu0 %v224
    %405 = vmatpush1.msra.mxu0 %v223
    %406 = vmatprep.subr.mxu0 %v228
    %407 = vmatpush1.msra.mxu0 %v227
    %408 = vmatprep.subr.mxu0 %v232
    %409 = vmatpush1.msra.mxu0 %v231
    %410 = vmatprep.subr.mxu0 %v236
    %411 = vmatpush1.msra.mxu0 %v235
    %412 = vmatprep.subr.mxu0 %v240
    %413 = vmatpush1.msra.mxu0 %v239
    %414 = vmatprep.subr.mxu0 %v244
    %415 = vmatpush1.msra.mxu0 %v243
    %416 = vmatprep.subr.mxu0 %v248
    %417 = vmatpush1.msra.mxu0 %v247
    %418 = vmatprep.subr.mxu0 %v252
    %419 = vmatpush1.msra.mxu0 %v251
    %420 = vmatprep.subr.mxu0 %v256
    %421 = vmatpush1.msra.mxu0 %v255
    %422 = vmatprep.subr.mxu0 %v260
    %423 = vmatpush1.msra.mxu0 %v259
    %424 = vmatprep.subr.mxu0 %v264
    %425 = vmatpush1.msra.mxu0 %v263
    %426 = vmatprep.subr.mxu0 %v268
    %427 = vmatpush1.msra.mxu0 %v267
    %428 = vmatprep.subr.mxu0 %v272
    %429 = vmatpush1.msra.mxu0 %v271
    %430 = vmatprep.subr.mxu0 %v276
    %431 = vmatpush1.msra.mxu0 %v275
    %432 = vmatprep.subr.mxu0 %v280
    %433 = vmatpush1.msra.mxu0 %v279
    %434 = vmatprep.subr.mxu0 %v284
    %435 = vmatpush1.msra.mxu0 %v283
    %436 = vmatprep.subr.mxu0 %v288
    %437 = vmatpush1.msra.mxu0 %v287
    %438 = vmatprep.subr.mxu0 %v292
    %439 = vmatpush1.msra.mxu0 %v291
    %440 = vmatprep.subr.mxu0 %v296
    %441 = vmatpush1.msra.mxu0 %v295
    %442 = vmatprep.subr.mxu0 %v300
    %443 = vmatpush1.msra.mxu0 %v299
    %444 = vmatprep.subr.mxu0 0.0
    %445 = vmatpush1.msra.mxu0 0.0
    %446 = vmatprep.subr.mxu0 0.0
    %447 = vmatpush1.msra.mxu0 0.0
    %448 = vmatprep.subr.mxu0 0.0
    %449 = vmatpush1.msra.mxu0 0.0
    %450 = vmatprep.subr.mxu0 0.0
    %451 = vmatpush1.msra.mxu0 0.0
    %452 = vmatprep.subr.mxu0 0.0
    %453 = vmatpush1.msra.mxu0 0.0
    %454 = vmatprep.subr.mxu0 0.0
    %455 = vmatpush1.msra.mxu0 0.0
    %456 = vmatprep.subr.mxu0 0.0
    %457 = vmatpush1.msra.mxu0 0.0
    %458 = vmatprep.mubr.f32.mxu0 %v303
    %459 = vmatmul.mubr.f32.gmra.mrb[0].mxu0 %v195
    %v460 = vpop.f32.mrb[0].mxu0
    %v461 = vadd.f32 0.0, %v460
    %v462 = vpop.f32.mrb[0].mxu0
    %v463 = vadd.f32 0.0, %v462
    %464 = vmatprep.mubr.f32.mxu0 %v306
    %465 = vmatmul.mubr.f32.gmra.mrb[0].mxu0 %v197
    %v466 = vpop.f32.mrb[0].mxu0
    %v467 = vadd.f32 0.0, %v466
    %v468 = vpop.f32.mrb[0].mxu0
    %v469 = vadd.f32 0.0, %v468
    %470 = vmatprep.mubr.f32.mxu0 %v309
    %471 = vmatmul.mubr.f32.gmra.mrb[0].mxu0 %v199
    %v472 = vpop.f32.mrb[0].mxu0
    %v473 = vadd.f32 0.0, %v472
    %v474 = vpop.f32.mrb[0].mxu0
    %v475 = vadd.f32 0.0, %v474
    %476 = vdwg.mxu0
    %v478 = vsel %vm301, %v90, 0
    %v481 = vsel %vm301, %v92, 0
    %v484 = vsel %vm301, %v94, 0
    %486 = vmatprep.subr.mxu0 %v96
    %487 = vmatpush1.msra.mxu0 %v95
    %488 = vmatprep.subr.mxu0 %v100
    %489 = vmatpush1.msra.mxu0 %v99
    %490 = vmatprep.subr.mxu0 %v104
    %491 = vmatpush1.msra.mxu0 %v103
    %492 = vmatprep.subr.mxu0 %v108
    %493 = vmatpush1.msra.mxu0 %v107
    %494 = vmatprep.subr.mxu0 %v112
    %495 = vmatpush1.msra.mxu0 %v111
    %496 = vmatprep.subr.mxu0 %v116
    %497 = vmatpush1.msra.mxu0 %v115
    %498 = vmatprep.subr.mxu0 %v120
    %499 = vmatpush1.msra.mxu0 %v119
    %500 = vmatprep.subr.mxu0 %v124
    %501 = vmatpush1.msra.mxu0 %v123
    %502 = vmatprep.subr.mxu0 %v128
    %503 = vmatpush1.msra.mxu0 %v127
    %504 = vmatprep.subr.mxu0 %v132
    %505 = vmatpush1.msra.mxu0 %v131
    %506 = vmatprep.subr.mxu0 %v136
    %507 = vmatpush1.msra.mxu0 %v135
    %508 = vmatprep.subr.mxu0 %v140
    %509 = vmatpush1.msra.mxu0 %v139
    %510 = vmatprep.subr.mxu0 %v144
    %511 = vmatpush1.msra.mxu0 %v143
    %512 = vmatprep.subr.mxu0 %v148
    %513 = vmatpush1.msra.mxu0 %v147
    %514 = vmatprep.subr.mxu0 %v152
    %515 = vmatpush1.msra.mxu0 %v151
    %516 = vmatprep.subr.mxu0 %v156
    %517 = vmatpush1.msra.mxu0 %v155
    %518 = vmatprep.subr.mxu0 %v160
    %519 = vmatpush1.msra.mxu0 %v159
    %520 = vmatprep.subr.mxu0 %v164
    %521 = vmatpush1.msra.mxu0 %v163
    %522 = vmatprep.subr.mxu0 %v168
    %523 = vmatpush1.msra.mxu0 %v167
    %524 = vmatprep.subr.mxu0 %v172
    %525 = vmatpush1.msra.mxu0 %v171
    %526 = vmatprep.subr.mxu0 %v176
    %527 = vmatpush1.msra.mxu0 %v175
    %528 = vmatprep.subr.mxu0 %v180
    %529 = vmatpush1.msra.mxu0 %v179
    %530 = vmatprep.subr.mxu0 %v184
    %531 = vmatpush1.msra.mxu0 %v183
    %532 = vmatprep.subr.mxu0 %v188
    %533 = vmatpush1.msra.mxu0 %v187
    %534 = vmatprep.subr.mxu0 %v192
    %535 = vmatpush1.msra.mxu0 %v191
    %536 = vmatprep.subr.mxu0 0.0
    %537 = vmatpush1.msra.mxu0 0.0
    %538 = vmatprep.subr.mxu0 0.0
    %539 = vmatpush1.msra.mxu0 0.0
    %540 = vmatprep.subr.mxu0 0.0
    %541 = vmatpush1.msra.mxu0 0.0
    %542 = vmatprep.subr.mxu0 0.0
    %543 = vmatpush1.msra.mxu0 0.0
    %544 = vmatprep.subr.mxu0 0.0
    %545 = vmatpush1.msra.mxu0 0.0
    %546 = vmatprep.subr.mxu0 0.0
    %547 = vmatpush1.msra.mxu0 0.0
    %548 = vmatprep.subr.mxu0 0.0
    %549 = vmatpush1.msra.mxu0 0.0
    %550 = vmatprep.mubr.f32.mxu0 %v478
    %551 = vmatmul.mubr.f32.gmra.mrb[0].mxu0 %v89
    %v552 = vpop.f32.mrb[0].mxu0
    %v553 = vadd.f32 %v378, %v552
    %v554 = vpop.f32.mrb[0].mxu0
    %v555 = vadd.f32 %v380, %v554
    %556 = vmatprep.mubr.f32.mxu0 %v481
    %557 = vmatmul.mubr.f32.gmra.mrb[0].mxu0 %v91
    %v558 = vpop.f32.mrb[0].mxu0
    %v559 = vadd.f32 %v384, %v558
    %v560 = vpop.f32.mrb[0].mxu0
    %v561 = vadd.f32 %v386, %v560
    %562 = vmatprep.mubr.f32.mxu0 %v484
    %563 = vmatmul.mubr.f32.gmra.mrb[0].mxu0 %v93
    %v564 = vpop.f32.mrb[0].mxu0
    %v565 = vadd.f32 %v390, %v564
    %v566 = vpop.f32.mrb[0].mxu0
    %v567 = vadd.f32 %v392, %v566
    %568 = vdwg.mxu0
    %569 = vmatprep.subr.mxu0 %v98
    %570 = vmatpush1.msra.mxu0 %v97
    %571 = vmatprep.subr.mxu0 %v102
    %572 = vmatpush1.msra.mxu0 %v101
    %573 = vmatprep.subr.mxu0 %v106
    %574 = vmatpush1.msra.mxu0 %v105
    %575 = vmatprep.subr.mxu0 %v110
    %576 = vmatpush1.msra.mxu0 %v109
    %577 = vmatprep.subr.mxu0 %v114
    %578 = vmatpush1.msra.mxu0 %v113
    %579 = vmatprep.subr.mxu0 %v118
    %580 = vmatpush1.msra.mxu0 %v117
    %581 = vmatprep.subr.mxu0 %v122
    %582 = vmatpush1.msra.mxu0 %v121
    %583 = vmatprep.subr.mxu0 %v126
    %584 = vmatpush1.msra.mxu0 %v125
    %585 = vmatprep.subr.mxu0 %v130
    %586 = vmatpush1.msra.mxu0 %v129
    %587 = vmatprep.subr.mxu0 %v134
    %588 = vmatpush1.msra.mxu0 %v133
    %589 = vmatprep.subr.mxu0 %v138
    %590 = vmatpush1.msra.mxu0 %v137
    %591 = vmatprep.subr.mxu0 %v142
    %592 = vmatpush1.msra.mxu0 %v141
    %593 = vmatprep.subr.mxu0 %v146
    %594 = vmatpush1.msra.mxu0 %v145
    %595 = vmatprep.subr.mxu0 %v150
    %596 = vmatpush1.msra.mxu0 %v149
    %597 = vmatprep.subr.mxu0 %v154
    %598 = vmatpush1.msra.mxu0 %v153
    %599 = vmatprep.subr.mxu0 %v158
    %600 = vmatpush1.msra.mxu0 %v157
    %601 = vmatprep.subr.mxu0 %v162
    %602 = vmatpush1.msra.mxu0 %v161
    %603 = vmatprep.subr.mxu0 %v166
    %604 = vmatpush1.msra.mxu0 %v165
    %605 = vmatprep.subr.mxu0 %v170
    %606 = vmatpush1.msra.mxu0 %v169
    %607 = vmatprep.subr.mxu0 %v174
    %608 = vmatpush1.msra.mxu0 %v173
    %609 = vmatprep.subr.mxu0 %v178
    %610 = vmatpush1.msra.mxu0 %v177
    %611 = vmatprep.subr.mxu0 %v182
    %612 = vmatpush1.msra.mxu0 %v181
    %613 = vmatprep.subr.mxu0 %v186
    %614 = vmatpush1.msra.mxu0 %v185
    %615 = vmatprep.subr.mxu0 %v190
    %616 = vmatpush1.msra.mxu0 %v189
    %617 = vmatprep.subr.mxu0 %v194
    %618 = vmatpush1.msra.mxu0 %v193
    %619 = vmatprep.subr.mxu0 0.0
    %620 = vmatpush1.msra.mxu0 0.0
    %621 = vmatprep.subr.mxu0 0.0
    %622 = vmatpush1.msra.mxu0 0.0
    %623 = vmatprep.subr.mxu0 0.0
    %624 = vmatpush1.msra.mxu0 0.0
    %625 = vmatprep.subr.mxu0 0.0
    %626 = vmatpush1.msra.mxu0 0.0
    %627 = vmatprep.subr.mxu0 0.0
    %628 = vmatpush1.msra.mxu0 0.0
    %629 = vmatprep.subr.mxu0 0.0
    %630 = vmatpush1.msra.mxu0 0.0
    %631 = vmatprep.subr.mxu0 0.0
    %632 = vmatpush1.msra.mxu0 0.0
    %633 = vmatprep.mubr.f32.mxu0 %v478
    %634 = vmatmul.mubr.f32.gmra.mrb[0].mxu0 %v89
    %v635 = vpop.f32.mrb[0].mxu0
    %v636 = vadd.f32 %v461, %v635
    %v637 = vpop.f32.mrb[0].mxu0
    %v638 = vadd.f32 %v463, %v637
    %639 = vmatprep.mubr.f32.mxu0 %v481
    %640 = vmatmul.mubr.f32.gmra.mrb[0].mxu0 %v91
    %v641 = vpop.f32.mrb[0].mxu0
    %v642 = vadd.f32 %v467, %v641
    %v643 = vpop.f32.mrb[0].mxu0
    %v644 = vadd.f32 %v469, %v643
    %645 = vmatprep.mubr.f32.mxu0 %v484
    %646 = vmatmul.mubr.f32.gmra.mrb[0].mxu0 %v93
    %v647 = vpop.f32.mrb[0].mxu0
    %v648 = vadd.f32 %v473, %v647
    %v649 = vpop.f32.mrb[0].mxu0
    %v650 = vadd.f32 %v475, %v649
    %651 = vdwg.mxu0
    %v652 = vmul.f32 %v553, %v553
    %v653 = vmul.f32 %v555, %v555
    %v654 = vmul.f32 %v559, %v559
    %v655 = vmul.f32 %v561, %v561
    %v656 = vmul.f32 %v565, %v565
    %v657 = vmul.f32 %v567, %v567
    %v658 = vmul.f32 %v636, %v636
    %v659 = vmul.f32 %v638, %v638
    %v660 = vmul.f32 %v642, %v642
    %v661 = vmul.f32 %v644, %v644
    %v662 = vmul.f32 %v648, %v648
    %v663 = vmul.f32 %v650, %v650
    %v664 = vadd.f32 %v652, %v658
    %v665 = vadd.f32 %v653, %v659
    %v666 = vadd.f32 %v654, %v660
    %v667 = vadd.f32 %v655, %v661
    %v668 = vadd.f32 %v656, %v662
    %v669 = vadd.f32 %v657, %v663
    %v670 = vld [vmem:[#allocation10] sm:$0xff]
    %v671 = vld [vmem:[#allocation10 + $0x8] sm:$0xff]
    %v672 = vld [vmem:[#allocation10 + $0x10] sm:$0xff]
    %v673 = vld [vmem:[#allocation10 + $0x18] sm:$0xff]
    %v674 = vld [vmem:[#allocation10 + $0x20] sm:$0xff]
    %v675 = vld [vmem:[#allocation10 + $0x28] sm:$0xff]
    %v676 = vld [vmem:[#allocation10 + $0x30] sm:$0xff]
    %v677 = vld [vmem:[#allocation10 + $0x38] sm:$0xff]
    %v678 = vld [vmem:[#allocation10 + $0x40] sm:$0xff]
    %v679 = vld [vmem:[#allocation10 + $0x48] sm:$0xff]
    %v680 = vld [vmem:[#allocation10 + $0x50] sm:$0xff]
    %v681 = vld [vmem:[#allocation10 + $0x58] sm:$0xff]
    %v682 = vld [vmem:[#allocation10 + $0x60] sm:$0xff]
    %v683 = vld [vmem:[#allocation10 + $0x68] sm:$0xff]
    %v684 = vld [vmem:[#allocation10 + $0x70] sm:$0xff]
    %v685 = vld [vmem:[#allocation10 + $0x78] sm:$0xff]
    %v686 = vld [vmem:[#allocation10 + $0x80] sm:$0xff]
    %v687 = vld [vmem:[#allocation10 + $0x88] sm:$0xff]
    %v688 = vld [vmem:[#allocation10 + $0x90] sm:$0xff]
    %v689 = vld [vmem:[#allocation10 + $0x98] sm:$0xff]
    %v690 = vld [vmem:[#allocation10 + $0xa0] sm:$0xff]
    %v691 = vld [vmem:[#allocation10 + $0xa8] sm:$0xff]
    %v692 = vld [vmem:[#allocation10 + $0xb0] sm:$0xff]
    %v693 = vld [vmem:[#allocation10 + $0xb8] sm:$0xff]
    %v694 = vld [vmem:[#allocation10 + $0xc0] sm:$0xff]
    %v695 = vld [vmem:[#allocation10 + $0xc8] sm:$0xff]
    %v696 = vld [vmem:[#allocation10 + $0xd0] sm:$0xff]
    %v697 = vld [vmem:[#allocation10 + $0xd8] sm:$0xff]
    %v698 = vld [vmem:[#allocation10 + $0xe0] sm:$0xff]
    %v699 = vld [vmem:[#allocation10 + $0xe8] sm:$0xff]
    %v700 = vld [vmem:[#allocation10 + $0xf0] sm:$0xff]
    %v701 = vld [vmem:[#allocation10 + $0xf8] sm:$0xff]
    %702 = vmatprep.subr.mxu0 0.0
    %703 = vmatpush1.msra.mxu0 %v670
    %704 = vmatprep.subr.mxu0 0.0
    %705 = vmatpush1.msra.mxu0 %v671
    %706 = vmatprep.subr.mxu0 0.0
    %707 = vmatpush1.msra.mxu0 %v672
    %708 = vmatprep.subr.mxu0 0.0
    %709 = vmatpush1.msra.mxu0 %v673
    %710 = vmatprep.subr.mxu0 0.0
    %711 = vmatpush1.msra.mxu0 %v674
    %712 = vmatprep.subr.mxu0 0.0
    %713 = vmatpush1.msra.mxu0 %v675
    %714 = vmatprep.subr.mxu0 0.0
    %715 = vmatpush1.msra.mxu0 %v676
    %716 = vmatprep.subr.mxu0 0.0
    %717 = vmatpush1.msra.mxu0 %v677
    %718 = vmatprep.subr.mxu0 0.0
    %719 = vmatpush1.msra.mxu0 %v678
    %720 = vmatprep.subr.mxu0 0.0
    %721 = vmatpush1.msra.mxu0 %v679
    %722 = vmatprep.subr.mxu0 0.0
    %723 = vmatpush1.msra.mxu0 %v680
    %724 = vmatprep.subr.mxu0 0.0
    %725 = vmatpush1.msra.mxu0 %v681
    %726 = vmatprep.subr.mxu0 0.0
    %727 = vmatpush1.msra.mxu0 %v682
    %728 = vmatprep.subr.mxu0 0.0
    %729 = vmatpush1.msra.mxu0 %v683
    %730 = vmatprep.subr.mxu0 0.0
    %731 = vmatpush1.msra.mxu0 %v684
    %732 = vmatprep.subr.mxu0 0.0
    %733 = vmatpush1.msra.mxu0 %v685
    %734 = vmatprep.subr.mxu0 0.0
    %735 = vmatpush1.msra.mxu0 %v686
    %736 = vmatprep.subr.mxu0 0.0
    %737 = vmatpush1.msra.mxu0 %v687
    %738 = vmatprep.subr.mxu0 0.0
    %739 = vmatpush1.msra.mxu0 %v688
    %740 = vmatprep.subr.mxu0 0.0
    %741 = vmatpush1.msra.mxu0 %v689
    %742 = vmatprep.subr.mxu0 0.0
    %743 = vmatpush1.msra.mxu0 %v690
    %744 = vmatprep.subr.mxu0 0.0
    %745 = vmatpush1.msra.mxu0 %v691
    %746 = vmatprep.subr.mxu0 0.0
    %747 = vmatpush1.msra.mxu0 %v692
    %748 = vmatprep.subr.mxu0 0.0
    %749 = vmatpush1.msra.mxu0 %v693
    %750 = vmatprep.subr.mxu0 0.0
    %751 = vmatpush1.msra.mxu0 %v694
    %752 = vmatprep.subr.mxu0 0.0
    %753 = vmatpush1.msra.mxu0 %v695
    %754 = vmatprep.subr.mxu0 0.0
    %755 = vmatpush1.msra.mxu0 %v696
    %756 = vmatprep.subr.mxu0 0.0
    %757 = vmatpush1.msra.mxu0 %v697
    %758 = vmatprep.subr.mxu0 0.0
    %759 = vmatpush1.msra.mxu0 %v698
    %760 = vmatprep.subr.mxu0 0.0
    %761 = vmatpush1.msra.mxu0 %v699
    %762 = vmatprep.subr.mxu0 0.0
    %763 = vmatpush1.msra.mxu0 %v700
    %764 = vmatprep.subr.mxu0 0.0
    %765 = vmatpush1.msra.mxu0 %v701
    %766 = vmatprep.mubr.f32.mxu0 %v665
    %767 = vmatmul.mubr.f32.gmra.mrb[0].mxu0 %v664
    %v768 = vpop.f32.mrb[0].mxu0
    %v769 = vadd.f32 0.0, %v768
    %v770 = vpop.f32.mrb[0].mxu0
    %771 = vmatprep.mubr.f32.mxu0 %v667
    %772 = vmatmul.mubr.f32.gmra.mrb[0].mxu0 %v666
    %v773 = vpop.f32.mrb[0].mxu0
    %v774 = vadd.f32 0.0, %v773
    %v775 = vpop.f32.mrb[0].mxu0
    %776 = vmatprep.mubr.f32.mxu0 %v669
    %777 = vmatmul.mubr.f32.gmra.mrb[0].mxu0 %v668
    %v778 = vpop.f32.mrb[0].mxu0
    %v779 = vadd.f32 0.0, %v778
    %v780 = vpop.f32.mrb[0].mxu0
    %781 = vdwg.mxu0
    %782 = vst [vmem:[#allocation11] sm:$0xff] %v769
    %783 = vst [vmem:[#allocation11 + $0x8] sm:$0xff] %v774
    %784 = vst [vmem:[#allocation11 + $0x10] sm:$0xff] %v779
    // Predicated region
    $region42: #{tpu_custom_call.1} parent=1 // pred_check
      _
    $region43: #{tpu_custom_call.1} parent=1 // pred_check_branch
      %786 = sbr.rel (0) target = $region45
    $region44: #{tpu_custom_call.1} parent=1 // pred_region
      %s788 = ssub.s32 384, 384
      %789 = vsyncadd [#allocation4], %s788
      %s790 = sshll.u32 [#allocation11], 4
      %s791 = int_to_ptr.vmem [resolvable:$true] %s790
      %796 = dma.vmem_to_hbm [thread:$0]  %s791, 384, %s5, [#allocation4], 128, 128, 8
    $region45: #{tpu_custom_call.1} parent=1 // pred_fallthru
      _
    // Predicated region
    $region46: #{tpu_custom_call.1} parent=1 // pred_check
      _
    $region47: #{tpu_custom_call.1} parent=1 // pred_check_branch
      %798 = sbr.rel (0) target = $region49
    $region48: #{tpu_custom_call.1} parent=1 // pred_region
      %799 = dma.done [#allocation4], 384
    $region49: #{tpu_custom_call.1} parent=1 // pred_fallthru
      _
    %800 = vsyncpa [#allocation3], 1
    %801 = vsyncpa [#allocation6], 1
    %802 = vsyncpa [#allocation9], 1
    %803 = vsyncpa [#allocation4], 1

</llo_original>
